<compile_context>
chip_gen: v5e
topology: v5e:2x2
jax: 0.10.0
libtpu: 0.0.40
codegen_flags: <defaults>
</compile_context>

<pallas_src>
import functools

import jax
import jax.numpy as jnp
from jax import lax
from jax.experimental import pallas as pl
from jax.experimental.pallas import tpu as pltpu


# ----------------------------------------------------------------------------
# Pallas kernel: one grid step per batch element.
# ----------------------------------------------------------------------------
def _psa_kernel(x_ref, pools_ref, wq_ref, wkv_ref, wp_ref,
                gamma_ref, beta_ref, bp_ref, o_ref, *, num_heads, ln_eps):
    C = x_ref.shape[-1]
    hd = C // num_heads

    # ---- LayerNorm over channels of this batch's pooled tokens (f32). ----
    pools = pools_ref[0].astype(jnp.float32)                   # (P, C)
    mu = jnp.mean(pools, axis=-1, keepdims=True)
    var = jnp.mean(jnp.square(pools - mu), axis=-1, keepdims=True)
    pn = (pools - mu) * lax.rsqrt(var + ln_eps)
    pn = pn * gamma_ref[...] + beta_ref[...]                    # (P, C) f32
    pn_bf = pn.astype(jnp.bfloat16)

    x_bf = x_ref[0].astype(jnp.bfloat16)                        # (N, C) in-kernel cast

    # ---- Head-fused projections (one MXU pass per operand). ----
    # Attention scale is folded into Wq on the host.
    q = jnp.dot(x_bf, wq_ref[...], preferred_element_type=jnp.float32)      # (N, C)
    kv = jnp.dot(pn_bf, wkv_ref[...], preferred_element_type=jnp.float32)   # (P, 2C)
    q_bf = q.astype(jnp.bfloat16)
    kv_bf = kv.astype(jnp.bfloat16)

    dn_nt = (((1,), (1,)), ((), ()))     # contract last dims of both operands (no transpose)

    # ---- Per-head attention; heads are tiny static lane slices. ----
    o_heads = []
    for h in range(num_heads):                                  # static, small
        qh = q_bf[:, h * hd:(h + 1) * hd]                       # (N, hd)
        kh = kv_bf[:, h * hd:(h + 1) * hd]                      # (P, hd)
        vh = kv_bf[:, C + h * hd:C + (h + 1) * hd]              # (P, hd)

        s = lax.dot_general(qh, kh, dimension_numbers=dn_nt,
                            preferred_element_type=jnp.float32)  # (N, P)
        s = s - jnp.max(s, axis=-1, keepdims=True)
        p = jnp.exp(s)                                           # unnormalized weights
        denom = jnp.sum(p, axis=-1, keepdims=True)               # (N, 1)

        oh = jnp.dot(p.astype(jnp.bfloat16), vh,
                     preferred_element_type=jnp.float32)         # (N, hd)
        # Deferred softmax normalization: N*hd multiplies instead of N*P.
        oh = oh * pl.reciprocal(denom, approx=True)
        o_heads.append(oh.astype(jnp.bfloat16))

    # ---- Lane-concat heads, single full-C output projection. ----
    o_cat = jnp.concatenate(o_heads, axis=-1)                    # (N, C) bf16
    out = jnp.dot(o_cat, wp_ref[...], preferred_element_type=jnp.float32)
    out = out + bp_ref[...]
    o_ref[0] = out.astype(o_ref.dtype)


def pooling_self_attention_pallas(x, pools, params, num_heads):
    """x: (B, N, C) f32, pools: (B, P, C) f32 -> (B, N, C) f32."""
    B, N, C = x.shape
    P = pools.shape[1]

    kernel = functools.partial(_psa_kernel, num_heads=num_heads, ln_eps=1e-5)

    # TODO(synk): pad P to a lane-friendly size (and mask padded columns) for a
    # small (~5-10%) softmax/reduction win; skipped at these toy shapes where
    # padding would add more MXU work than it saves.
    out = pl.pallas_call(
        kernel,
        out_shape=jax.ShapeDtypeStruct((B, N, C), x.dtype),
        grid=(B,),
        in_specs=[
            pl.BlockSpec((1, N, C), lambda b: (b, 0, 0)),        # x (f32, cast in-kernel)
            pl.BlockSpec((1, P, C), lambda b: (b, 0, 0)),        # pooled tokens (f32)
            pl.BlockSpec((C, C), lambda b: (0, 0)),              # Wq (scale folded, bf16)
            pl.BlockSpec((C, 2 * C), lambda b: (0, 0)),          # fused Wkv (bf16)
            pl.BlockSpec((C, C), lambda b: (0, 0)),              # Wproj (bf16)
            pl.BlockSpec((1, C), lambda b: (0, 0)),              # LN gamma
            pl.BlockSpec((1, C), lambda b: (0, 0)),              # LN beta
            pl.BlockSpec((1, C), lambda b: (0, 0)),              # proj bias
        ],
        out_specs=pl.BlockSpec((1, N, C), lambda b: (b, 0, 0)),
        compiler_params=pltpu.CompilerParams(
            dimension_semantics=("parallel",)),
    )(x, pools,
      params["wq"], params["wkv"], params["wp"],
      params["gamma"], params["beta"], params["bp"])
    return out


# ----------------------------------------------------------------------------
# Plain-JAX glue: pyramid adaptive pooling + depthwise 3x3 convs (d_convs).
# These operate on tiny pooled maps; the attention hot path is in Pallas.
# ----------------------------------------------------------------------------
def adaptive_avg_pool2d(x, out_h, out_w):
    """PyTorch-compatible adaptive average pooling, NCHW."""
    B, C, H, W = x.shape
    rows = []
    for i in range(out_h):
        h0 = (i * H) // out_h
        h1 = -(-((i + 1) * H) // out_h)
        cols = []
        for j in range(out_w):
            w0 = (j * W) // out_w
            w1 = -(-((j + 1) * W) // out_w)
            cols.append(jnp.mean(x[:, :, h0:h1, w0:w1], axis=(2, 3)))
        rows.append(jnp.stack(cols, axis=-1))
    return jnp.stack(rows, axis=-2)  # (B, C, out_h, out_w)


def pyramid_pools(x, H, W, pool_ratios, dconv_params):
    """x: (B, N, C) -> pooled tokens (B, P, C), like the PyTorch module."""
    B, N, C = x.shape
    x_ = jnp.transpose(x, (0, 2, 1)).reshape(B, C, H, W)   # NCHW
    outs = []
    for pr, (w, b) in zip(pool_ratios, dconv_params):
        oh, ow = int(round(H / pr)), int(round(W / pr))
        pool = adaptive_avg_pool2d(x_, oh, ow)
        conv = jax.lax.conv_general_dilated(
            pool, w, window_strides=(1, 1), padding=((1, 1), (1, 1)),
            dimension_numbers=('NCHW', 'OIHW', 'NCHW'), feature_group_count=C)
        pool = pool + conv + b[None, :, None, None]        # pool + l(pool)
        outs.append(pool.reshape(B, C, -1))
    pools = jnp.concatenate(outs, axis=2)                  # (B, C, P)
    return jnp.transpose(pools, (0, 2, 1))                 # (B, P, C)


# ----------------------------------------------------------------------------
# Pure-JAX reference for correctness check (f32 throughout).
# ----------------------------------------------------------------------------
def reference(x, pools, wq, wkv, wp, bp, gamma, beta, num_heads):
    B, N, C = x.shape
    hd = C // num_heads
    scale = hd ** -0.5
    mu = pools.mean(-1, keepdims=True)
    var = ((pools - mu) ** 2).mean(-1, keepdims=True)
    pn = (pools - mu) / jnp.sqrt(var + 1e-5) * gamma + beta
    q = x @ wq.T
    kv = pn @ wkv.T
    q = q.reshape(B, N, num_heads, hd).transpose(0, 2, 1, 3)
    k = kv[..., :C].reshape(B, -1, num_heads, hd).transpose(0, 2, 1, 3)
    v = kv[..., C:].reshape(B, -1, num_heads, hd).transpose(0, 2, 1, 3)
    attn = jax.nn.softmax((q @ jnp.swapaxes(k, -2, -1)) * scale, axis=-1)
    o = (attn @ v).transpose(0, 2, 1, 3).reshape(B, N, C)
    return o @ wp.T + bp


# ----------------------------------------------------------------------------
# Main
# ----------------------------------------------------------------------------
if __name__ == "__main__":
    B, C, num_heads = 2, 32, 2
    H = W = 6
    N = H * W
    hd = C // num_heads
    scale = hd ** -0.5
    pool_ratios = [1, 2, 3, 6]    # pooled sizes 6,3,2,1 -> P = 36+9+4+1 = 50

    key = jax.random.PRNGKey(0)
    ks = jax.random.split(key, 16)

    # nn.Linear weights are (out, in); the kernel consumes their transposes,
    # with the attention scale folded into Wq and K/V fused along lanes.
    wq = 0.05 * jax.random.normal(ks[0], (C, C), jnp.float32)
    wkv = 0.05 * jax.random.normal(ks[1], (2 * C, C), jnp.float32)
    wp = 0.05 * jax.random.normal(ks[2], (C, C), jnp.float32)
    bp = 0.05 * jax.random.normal(ks[3], (C,), jnp.float32)
    gamma = 1.0 + 0.05 * jax.random.normal(ks[4], (C,), jnp.float32)
    beta = 0.05 * jax.random.normal(ks[5], (C,), jnp.float32)

    # d_convs: one depthwise 3x3 conv (pad=1, groups=C) per pool ratio.
    dconv_params = []
    for i in range(len(pool_ratios)):
        dw = 0.05 * jax.random.normal(ks[6 + 2 * i], (C, 1, 3, 3), jnp.float32)
        db = 0.05 * jax.random.normal(ks[7 + 2 * i], (C,), jnp.float32)
        dconv_params.append((dw, db))

    params = dict(
        wq=(wq.T * scale).astype(jnp.bfloat16),           # (C, C), scale folded
        wkv=wkv.T.astype(jnp.bfloat16),                    # (C, 2C), K cols then V cols
        wp=wp.T.astype(jnp.bfloat16),                      # (C, C)
        gamma=gamma.reshape(1, C),
        beta=beta.reshape(1, C),
        bp=bp.reshape(1, C),
    )

    x = jax.random.normal(ks[15], (B, N, C), jnp.float32)

    pools = pyramid_pools(x, H, W, pool_ratios, dconv_params)
    out = pooling_self_attention_pallas(x, pools, params, num_heads)
    jax.block_until_ready(out)

    ref = reference(x, pools, wq, wkv, wp, bp.reshape(1, C),
                    gamma.reshape(1, C), beta.reshape(1, C), num_heads)
    assert out.shape == (B, N, C)
    # bf16 matmul operands + approx reciprocal -> looser tolerance than pure f32.
    assert jnp.max(jnp.abs(out - ref)) < 2e-2, "Pallas output mismatch vs reference"

    print("KERNEL_OK")
</pallas_src>

<mosaic_0001>
module attributes {stable_mosaic.version = 11 : i64} {
  func.func @_psa_kernel(%arg0: i32, %arg1: memref<1x36x32xf32, #tpu.memory_space<vmem>>, %arg2: memref<1x50x32xf32, #tpu.memory_space<vmem>>, %arg3: memref<32x32xbf16, #tpu.memory_space<vmem>>, %arg4: memref<32x64xbf16, #tpu.memory_space<vmem>>, %arg5: memref<32x32xbf16, #tpu.memory_space<vmem>>, %arg6: memref<1x32xf32, #tpu.memory_space<vmem>>, %arg7: memref<1x32xf32, #tpu.memory_space<vmem>>, %arg8: memref<1x32xf32, #tpu.memory_space<vmem>>, %arg9: memref<1x36x32xf32, #tpu.memory_space<vmem>>) attributes {dimension_semantics = [#tpu.dimension_semantics<parallel>], iteration_bounds = array<i64: 2>, scalar_prefetch = 0 : i64, scratch_operands = 0 : i64, tpu.core_type = #tpu.core_type<tc>, window_params = [{transform_indices = @transform_0, window_bounds = array<i64: 1, 36, 32>}, {transform_indices = @transform_1, window_bounds = array<i64: 1, 50, 32>}, {pipeline_mode = #tpu.pipeline_mode<synchronous>, transform_indices = @transform_2, window_bounds = array<i64: 32, 32>}, {pipeline_mode = #tpu.pipeline_mode<synchronous>, transform_indices = @transform_3, window_bounds = array<i64: 32, 64>}, {pipeline_mode = #tpu.pipeline_mode<synchronous>, transform_indices = @transform_4, window_bounds = array<i64: 32, 32>}, {pipeline_mode = #tpu.pipeline_mode<synchronous>, transform_indices = @transform_5, window_bounds = array<i64: 1, 32>}, {pipeline_mode = #tpu.pipeline_mode<synchronous>, transform_indices = @transform_6, window_bounds = array<i64: 1, 32>}, {pipeline_mode = #tpu.pipeline_mode<synchronous>, transform_indices = @transform_7, window_bounds = array<i64: 1, 32>}, {transform_indices = @transform_8, window_bounds = array<i64: 1, 36, 32>}]} {
    %c0 = arith.constant 0 : index
    %c0_0 = arith.constant 0 : index
    %c0_1 = arith.constant 0 : index
    %0 = vector.load %arg2[%c0, %c0_0, %c0_1] : memref<1x50x32xf32, #tpu.memory_space<vmem>>, vector<1x50x32xf32>
    %1 = vector.shape_cast %0 : vector<1x50x32xf32> to vector<50x32xf32>
    %cst = arith.constant dense<0.000000e+00> : vector<50xf32>
    %2 = vector.multi_reduction <add>, %1, %cst [1] : vector<50x32xf32> to vector<50xf32>
    %3 = vector.shape_cast %2 : vector<50xf32> to vector<50x1xf32>
    %cst_2 = arith.constant 3.200000e+01 : f32
    %4 = vector.broadcast %cst_2 : f32 to vector<50x1xf32>
    %5 = arith.divf %3, %4 : vector<50x1xf32>
    %6 = vector.broadcast %5 : vector<50x1xf32> to vector<50x32xf32>
    %7 = arith.subf %1, %6 : vector<50x32xf32>
    %8 = arith.mulf %7, %7 : vector<50x32xf32>
    %cst_3 = arith.constant dense<0.000000e+00> : vector<50xf32>
    %9 = vector.multi_reduction <add>, %8, %cst_3 [1] : vector<50x32xf32> to vector<50xf32>
    %10 = vector.shape_cast %9 : vector<50xf32> to vector<50x1xf32>
    %cst_4 = arith.constant 3.200000e+01 : f32
    %11 = vector.broadcast %cst_4 : f32 to vector<50x1xf32>
    %12 = arith.divf %10, %11 : vector<50x1xf32>
    %13 = vector.broadcast %5 : vector<50x1xf32> to vector<50x32xf32>
    %14 = arith.subf %1, %13 : vector<50x32xf32>
    %cst_5 = arith.constant 9.99999974E-6 : f32
    %15 = vector.broadcast %cst_5 : f32 to vector<50x1xf32>
    %16 = arith.addf %12, %15 : vector<50x1xf32>
    %17 = math.rsqrt %16 : vector<50x1xf32>
    %18 = vector.broadcast %17 : vector<50x1xf32> to vector<50x32xf32>
    %19 = arith.mulf %14, %18 : vector<50x32xf32>
    %c0_6 = arith.constant 0 : index
    %c0_7 = arith.constant 0 : index
    %20 = vector.load %arg6[%c0_6, %c0_7] : memref<1x32xf32, #tpu.memory_space<vmem>>, vector<1x32xf32>
    %21 = vector.broadcast %20 : vector<1x32xf32> to vector<50x32xf32>
    %22 = arith.mulf %19, %21 : vector<50x32xf32>
    %c0_8 = arith.constant 0 : index
    %c0_9 = arith.constant 0 : index
    %23 = vector.load %arg7[%c0_8, %c0_9] : memref<1x32xf32, #tpu.memory_space<vmem>>, vector<1x32xf32>
    %24 = vector.broadcast %23 : vector<1x32xf32> to vector<50x32xf32>
    %25 = arith.addf %22, %24 : vector<50x32xf32>
    %26 = arith.truncf %25 : vector<50x32xf32> to vector<50x32xbf16>
    %c0_10 = arith.constant 0 : index
    %c0_11 = arith.constant 0 : index
    %c0_12 = arith.constant 0 : index
    %27 = vector.load %arg1[%c0_10, %c0_11, %c0_12] : memref<1x36x32xf32, #tpu.memory_space<vmem>>, vector<1x36x32xf32>
    %28 = vector.shape_cast %27 : vector<1x36x32xf32> to vector<36x32xf32>
    %29 = arith.truncf %28 : vector<36x32xf32> to vector<36x32xbf16>
    %c0_13 = arith.constant 0 : index
    %c0_14 = arith.constant 0 : index
    %30 = vector.load %arg3[%c0_13, %c0_14] : memref<32x32xbf16, #tpu.memory_space<vmem>>, vector<32x32xbf16>
    %cst_15 = arith.constant dense<0.000000e+00> : vector<36x32xf32>
    %31 = tpu.matmul %29, %30, %cst_15 {dimension_numbers = #tpu.dot_dimension_numbers<[1], [0], [0], [1], [0, 0, 1, 1], [], []>} : vector<36x32xbf16>, vector<32x32xbf16>, vector<36x32xf32> -> vector<36x32xf32>
    %c0_16 = arith.constant 0 : index
    %c0_17 = arith.constant 0 : index
    %32 = vector.load %arg4[%c0_16, %c0_17] : memref<32x64xbf16, #tpu.memory_space<vmem>>, vector<32x64xbf16>
    %cst_18 = arith.constant dense<0.000000e+00> : vector<50x64xf32>
    %33 = tpu.matmul %26, %32, %cst_18 {dimension_numbers = #tpu.dot_dimension_numbers<[1], [0], [0], [1], [0, 0, 1, 1], [], []>} : vector<50x32xbf16>, vector<32x64xbf16>, vector<50x64xf32> -> vector<50x64xf32>
    %34 = arith.truncf %31 : vector<36x32xf32> to vector<36x32xbf16>
    %35 = arith.truncf %33 : vector<50x64xf32> to vector<50x64xbf16>
    %36 = vector.extract_strided_slice %34 {offsets = [0, 0], sizes = [36, 16], strides = [1, 1]} : vector<36x32xbf16> to vector<36x16xbf16>
    %37 = vector.extract_strided_slice %35 {offsets = [0, 0], sizes = [50, 16], strides = [1, 1]} : vector<50x64xbf16> to vector<50x16xbf16>
    %38 = vector.extract_strided_slice %35 {offsets = [0, 32], sizes = [50, 16], strides = [1, 1]} : vector<50x64xbf16> to vector<50x16xbf16>
    %cst_19 = arith.constant dense<0.000000e+00> : vector<36x50xf32>
    %39 = tpu.matmul %36, %37, %cst_19 {dimension_numbers = #tpu.dot_dimension_numbers<[1], [1], [0], [0], [0, 0, 1, 0], [], []>} : vector<36x16xbf16>, vector<50x16xbf16>, vector<36x50xf32> -> vector<36x50xf32>
    %cst_20 = arith.constant dense<0xFF800000> : vector<36xf32>
    %40 = vector.multi_reduction <maximumf>, %39, %cst_20 [1] : vector<36x50xf32> to vector<36xf32>
    %41 = vector.shape_cast %40 : vector<36xf32> to vector<36x1xf32>
    %42 = vector.broadcast %41 : vector<36x1xf32> to vector<36x50xf32>
    %43 = arith.subf %39, %42 : vector<36x50xf32>
    %44 = math.exp %43 : vector<36x50xf32>
    %cst_21 = arith.constant dense<0.000000e+00> : vector<36xf32>
    %45 = vector.multi_reduction <add>, %44, %cst_21 [1] : vector<36x50xf32> to vector<36xf32>
    %46 = vector.shape_cast %45 : vector<36xf32> to vector<36x1xf32>
    %47 = arith.truncf %44 : vector<36x50xf32> to vector<36x50xbf16>
    %cst_22 = arith.constant dense<0.000000e+00> : vector<36x16xf32>
    %48 = tpu.matmul %47, %38, %cst_22 {dimension_numbers = #tpu.dot_dimension_numbers<[1], [0], [0], [1], [0, 0, 1, 1], [], []>} : vector<36x50xbf16>, vector<50x16xbf16>, vector<36x16xf32> -> vector<36x16xf32>
    %49 = tpu.reciprocal %46 {approx = true} : vector<36x1xf32> -> vector<36x1xf32>
    %50 = vector.broadcast %49 : vector<36x1xf32> to vector<36x16xf32>
    %51 = arith.mulf %48, %50 : vector<36x16xf32>
    %52 = arith.truncf %51 : vector<36x16xf32> to vector<36x16xbf16>
    %53 = vector.extract_strided_slice %34 {offsets = [0, 16], sizes = [36, 16], strides = [1, 1]} : vector<36x32xbf16> to vector<36x16xbf16>
    %54 = vector.extract_strided_slice %35 {offsets = [0, 16], sizes = [50, 16], strides = [1, 1]} : vector<50x64xbf16> to vector<50x16xbf16>
    %55 = vector.extract_strided_slice %35 {offsets = [0, 48], sizes = [50, 16], strides = [1, 1]} : vector<50x64xbf16> to vector<50x16xbf16>
    %cst_23 = arith.constant dense<0.000000e+00> : vector<36x50xf32>
    %56 = tpu.matmul %53, %54, %cst_23 {dimension_numbers = #tpu.dot_dimension_numbers<[1], [1], [0], [0], [0, 0, 1, 0], [], []>} : vector<36x16xbf16>, vector<50x16xbf16>, vector<36x50xf32> -> vector<36x50xf32>
    %cst_24 = arith.constant dense<0xFF800000> : vector<36xf32>
    %57 = vector.multi_reduction <maximumf>, %56, %cst_24 [1] : vector<36x50xf32> to vector<36xf32>
    %58 = vector.shape_cast %57 : vector<36xf32> to vector<36x1xf32>
    %59 = vector.broadcast %58 : vector<36x1xf32> to vector<36x50xf32>
    %60 = arith.subf %56, %59 : vector<36x50xf32>
    %61 = math.exp %60 : vector<36x50xf32>
    %cst_25 = arith.constant dense<0.000000e+00> : vector<36xf32>
    %62 = vector.multi_reduction <add>, %61, %cst_25 [1] : vector<36x50xf32> to vector<36xf32>
    %63 = vector.shape_cast %62 : vector<36xf32> to vector<36x1xf32>
    %64 = arith.truncf %61 : vector<36x50xf32> to vector<36x50xbf16>
    %cst_26 = arith.constant dense<0.000000e+00> : vector<36x16xf32>
    %65 = tpu.matmul %64, %55, %cst_26 {dimension_numbers = #tpu.dot_dimension_numbers<[1], [0], [0], [1], [0, 0, 1, 1], [], []>} : vector<36x50xbf16>, vector<50x16xbf16>, vector<36x16xf32> -> vector<36x16xf32>
    %66 = tpu.reciprocal %63 {approx = true} : vector<36x1xf32> -> vector<36x1xf32>
    %67 = vector.broadcast %66 : vector<36x1xf32> to vector<36x16xf32>
    %68 = arith.mulf %65, %67 : vector<36x16xf32>
    %69 = arith.truncf %68 : vector<36x16xf32> to vector<36x16xbf16>
    %70 = tpu.concatenate %52, %69 in 1 : vector<36x16xbf16>, vector<36x16xbf16> -> vector<36x32xbf16>
    %c0_27 = arith.constant 0 : index
    %c0_28 = arith.constant 0 : index
    %71 = vector.load %arg5[%c0_27, %c0_28] : memref<32x32xbf16, #tpu.memory_space<vmem>>, vector<32x32xbf16>
    %cst_29 = arith.constant dense<0.000000e+00> : vector<36x32xf32>
    %72 = tpu.matmul %70, %71, %cst_29 {dimension_numbers = #tpu.dot_dimension_numbers<[1], [0], [0], [1], [0, 0, 1, 1], [], []>} : vector<36x32xbf16>, vector<32x32xbf16>, vector<36x32xf32> -> vector<36x32xf32>
    %c0_30 = arith.constant 0 : index
    %c0_31 = arith.constant 0 : index
    %73 = vector.load %arg8[%c0_30, %c0_31] : memref<1x32xf32, #tpu.memory_space<vmem>>, vector<1x32xf32>
    %74 = vector.broadcast %73 : vector<1x32xf32> to vector<36x32xf32>
    %75 = arith.addf %72, %74 : vector<36x32xf32>
    %c0_32 = arith.constant 0 : index
    %c0_33 = arith.constant 0 : index
    %c0_34 = arith.constant 0 : index
    %76 = vector.load %arg9[%c0_32, %c0_33, %c0_34] : memref<1x36x32xf32, #tpu.memory_space<vmem>>, vector<1x36x32xf32>
    %77 = vector.shape_cast %76 : vector<1x36x32xf32> to vector<36x32xf32>
    %78 = vector.shape_cast %75 : vector<36x32xf32> to vector<1x36x32xf32>
    tpu.vector_store %arg9[%c0_32, %c0_33, %c0_34], %78 {strides = array<i32>} : memref<1x36x32xf32, #tpu.memory_space<vmem>>, vector<1x36x32xf32>,
    return
  }
  func.func @transform_0(%arg0: i32) -> (i32, i32, i32) {
    %c0_i32 = arith.constant 0 : i32
    %c0_i32_0 = arith.constant 0 : i32
    %c0_i32_1 = arith.constant 0 : i32
    return %arg0, %c0_i32, %c0_i32_0 : i32, i32, i32
  }
  func.func @transform_1(%arg0: i32) -> (i32, i32, i32) {
    %c0_i32 = arith.constant 0 : i32
    %c0_i32_0 = arith.constant 0 : i32
    %c0_i32_1 = arith.constant 0 : i32
    return %arg0, %c0_i32, %c0_i32_0 : i32, i32, i32
  }
  func.func @transform_2(%arg0: i32) -> (i32, i32) {
    %c0_i32 = arith.constant 0 : i32
    %c0_i32_0 = arith.constant 0 : i32
    %c0_i32_1 = arith.constant 0 : i32
    return %c0_i32, %c0_i32_0 : i32, i32
  }
  func.func @transform_3(%arg0: i32) -> (i32, i32) {
    %c0_i32 = arith.constant 0 : i32
    %c0_i32_0 = arith.constant 0 : i32
    %c0_i32_1 = arith.constant 0 : i32
    return %c0_i32, %c0_i32_0 : i32, i32
  }
  func.func @transform_4(%arg0: i32) -> (i32, i32) {
    %c0_i32 = arith.constant 0 : i32
    %c0_i32_0 = arith.constant 0 : i32
    %c0_i32_1 = arith.constant 0 : i32
    return %c0_i32, %c0_i32_0 : i32, i32
  }
  func.func @transform_5(%arg0: i32) -> (i32, i32) {
    %c0_i32 = arith.constant 0 : i32
    %c0_i32_0 = arith.constant 0 : i32
    %c0_i32_1 = arith.constant 0 : i32
    return %c0_i32, %c0_i32_0 : i32, i32
  }
  func.func @transform_6(%arg0: i32) -> (i32, i32) {
    %c0_i32 = arith.constant 0 : i32
    %c0_i32_0 = arith.constant 0 : i32
    %c0_i32_1 = arith.constant 0 : i32
    return %c0_i32, %c0_i32_0 : i32, i32
  }
  func.func @transform_7(%arg0: i32) -> (i32, i32) {
    %c0_i32 = arith.constant 0 : i32
    %c0_i32_0 = arith.constant 0 : i32
    %c0_i32_1 = arith.constant 0 : i32
    return %c0_i32, %c0_i32_0 : i32, i32
  }
  func.func @transform_8(%arg0: i32) -> (i32, i32, i32) {
    %c0_i32 = arith.constant 0 : i32
    %c0_i32_0 = arith.constant 0 : i32
    %c0_i32_1 = arith.constant 0 : i32
    return %arg0, %c0_i32, %c0_i32_0 : i32, i32, i32
  }
}

</mosaic_0001>

<llo_original>
// kernel: tpu_custom_call.1
$region0: #{tpu_custom_call.1}
  #allocation0 [shape = 'u32[]', space=smem, size = 0x4, offset = 0x4, fixed_abs, tag = 'smem constant byte address 0x4 - core index']
  #allocation1 [shape = 'u32[72,128]{1,0:T(1,128)}', space=vmem, size = 0x9000, scoped, tag = 'internal scratch']
  %s0 = inlined_call_operand.vmem [shape: f32[2,36,32], index: 0, kind: input, shape index: {}]
  %s1 = inlined_call_operand.vmem [shape: f32[2,50,32], index: 1, kind: input, shape index: {}]
  %s2 = inlined_call_operand.vmem [shape: bf16[32,32], index: 2, kind: input, shape index: {}]
  %s3 = inlined_call_operand.vmem [shape: bf16[32,64], index: 3, kind: input, shape index: {}]
  %s4 = inlined_call_operand.vmem [shape: bf16[32,32], index: 4, kind: input, shape index: {}]
  %s5 = inlined_call_operand.vmem [shape: f32[1,32], index: 5, kind: input, shape index: {}]
  %s6 = inlined_call_operand.vmem [shape: f32[1,32], index: 6, kind: input, shape index: {}]
  %s7 = inlined_call_operand.vmem [shape: f32[1,32], index: 7, kind: input, shape index: {}]
  %s8 = inlined_call_operand.vmem [shape: f32[2,36,32], index: 8, kind: output, shape index: {}]
  %s9 = sld [smem:[#allocation0]]
  $region65: #{tpu_custom_call.1} parent=0
    _
  %s11 = ssub.s32 1, %s9
  %s12 = scalar_select 0, %s11, %s9
  loop: start=0, step=1, limit=4
  $region2: #{tpu_custom_call.1} parent=0 // loop_pre_header
    _
  $region3: #{tpu_custom_call.1} parent=0 // loop_header
    %s14 = sphi 0, %s18
    %p15 = scmp.ge.s32.totalorder %s14, 4
    %s24 = sphi 0, %s26
    %s27 = sphi 0, %s24
    %s28 = sphi 0, %s27
    %s44 = sphi 0, %s28
    %s50 = sphi 0, %s52
    %s53 = sphi 0, %s50
    %s54 = sphi 0, %s53
    %s70 = sphi 0, %s54
    %s74 = sphi 0, %s74
    %s76 = sphi 0, %s74
    %s77 = sphi 0, %s76
    %s91 = sphi 0, %s77
    %s95 = sphi 0, %s95
    %s97 = sphi 0, %s95
    %s98 = sphi 0, %s97
    %s112 = sphi 0, %s98
    %s116 = sphi 0, %s116
    %s118 = sphi 0, %s116
    %s119 = sphi 0, %s118
    %s133 = sphi 0, %s119
    %s137 = sphi 0, %s137
    %s139 = sphi 0, %s137
    %s140 = sphi 0, %s139
    %s154 = sphi 0, %s140
    %s158 = sphi 0, %s158
    %s160 = sphi 0, %s158
    %s161 = sphi 0, %s160
    %s175 = sphi 0, %s161
    %s179 = sphi 0, %s179
    %s181 = sphi 0, %s179
    %s182 = sphi 0, %s181
    %s196 = sphi 0, %s182
    %s202 = sphi 0, %s204
    %s205 = sphi 0, %s202
    %s206 = sphi 0, %s205
    %s222 = sphi 0, %s206
  $region4: #{tpu_custom_call.1} parent=0 // loop_header_branch
    %17 = sbr.rel (%p15) target = $region8
  $region5: #{tpu_custom_call.1} parent=0 // loop_body
    %s19 = ssub.s32 %s14, 1
    %s20 = ssub.s32 %s14, 2
    %s21 = sadd.s32 %s14, 1
    %s22 = ssub.s32 %s14, %s21
    %p23 = scmp.eq.s32.totalorder %s22, 0
    %s25 = sadd.s32 %s24, 1
    %s26 = scalar_select %p23, %s24, %s25
    %p29 = pneg %p23
    %p30 = scmp.eq.s32.totalorder %s14, 1
    %p31 = por %p29, %p30
    %p32 = scmp.ne.s32.totalorder %s24, %s27
    %p33 = scmp.eq.s32.totalorder %s14, 0
    %p34 = por %p32, %p33
    %p35 = scmp.ne.s32.totalorder %s24, %s27
    %p36 = scmp.eq.s32.totalorder %s19, 1
    %p37 = por %p35, %p36
    %p38 = scmp.ne.s32.totalorder %s27, %s28
    %p39 = scmp.eq.s32.totalorder %s19, 0
    %p40 = por %p38, %p39
    %p41 = scmp.ne.s32.totalorder %s27, %s28
    %p42 = scmp.eq.s32.totalorder %s20, 1
    %p43 = por %p41, %p42
    %p45 = scmp.ne.s32.totalorder %s28, %s44
    %p46 = scmp.eq.s32.totalorder %s20, 0
    %p47 = por %p45, %p46
    %s48 = ssub.s32 %s14, %s21
    %p49 = scmp.eq.s32.totalorder %s48, 0
    %s51 = sadd.s32 %s50, 1
    %s52 = scalar_select %p49, %s50, %s51
    %p55 = pneg %p49
    %p56 = scmp.eq.s32.totalorder %s14, 1
    %p57 = por %p55, %p56
    %p58 = scmp.ne.s32.totalorder %s50, %s53
    %p59 = scmp.eq.s32.totalorder %s14, 0
    %p60 = por %p58, %p59
    %p61 = scmp.ne.s32.totalorder %s50, %s53
    %p62 = scmp.eq.s32.totalorder %s19, 1
    %p63 = por %p61, %p62
    %p64 = scmp.ne.s32.totalorder %s53, %s54
    %p65 = scmp.eq.s32.totalorder %s19, 0
    %p66 = por %p64, %p65
    %p67 = scmp.ne.s32.totalorder %s53, %s54
    %p68 = scmp.eq.s32.totalorder %s20, 1
    %p69 = por %p67, %p68
    %p71 = scmp.ne.s32.totalorder %s54, %s70
    %p72 = scmp.eq.s32.totalorder %s20, 0
    %p73 = por %p71, %p72
    %s75 = sadd.s32 %s74, 1
    %p78 = scmp.eq.s32.totalorder %s14, 1
    %p79 = scmp.ne.s32.totalorder %s74, %s76
    %p80 = scmp.eq.s32.totalorder %s14, 0
    %p81 = por %p79, %p80
    %p82 = scmp.ne.s32.totalorder %s74, %s76
    %p83 = scmp.eq.s32.totalorder %s19, 1
    %p84 = por %p82, %p83
    %p85 = scmp.ne.s32.totalorder %s76, %s77
    %p86 = scmp.eq.s32.totalorder %s19, 0
    %p87 = por %p85, %p86
    %p88 = scmp.ne.s32.totalorder %s76, %s77
    %p89 = scmp.eq.s32.totalorder %s20, 1
    %p90 = por %p88, %p89
    %p92 = scmp.ne.s32.totalorder %s77, %s91
    %p93 = scmp.eq.s32.totalorder %s20, 0
    %p94 = por %p92, %p93
    %s96 = sadd.s32 %s95, 1
    %p99 = scmp.eq.s32.totalorder %s14, 1
    %p100 = scmp.ne.s32.totalorder %s95, %s97
    %p101 = scmp.eq.s32.totalorder %s14, 0
    %p102 = por %p100, %p101
    %p103 = scmp.ne.s32.totalorder %s95, %s97
    %p104 = scmp.eq.s32.totalorder %s19, 1
    %p105 = por %p103, %p104
    %p106 = scmp.ne.s32.totalorder %s97, %s98
    %p107 = scmp.eq.s32.totalorder %s19, 0
    %p108 = por %p106, %p107
    %p109 = scmp.ne.s32.totalorder %s97, %s98
    %p110 = scmp.eq.s32.totalorder %s20, 1
    %p111 = por %p109, %p110
    %p113 = scmp.ne.s32.totalorder %s98, %s112
    %p114 = scmp.eq.s32.totalorder %s20, 0
    %p115 = por %p113, %p114
    %s117 = sadd.s32 %s116, 1
    %p120 = scmp.eq.s32.totalorder %s14, 1
    %p121 = scmp.ne.s32.totalorder %s116, %s118
    %p122 = scmp.eq.s32.totalorder %s14, 0
    %p123 = por %p121, %p122
    %p124 = scmp.ne.s32.totalorder %s116, %s118
    %p125 = scmp.eq.s32.totalorder %s19, 1
    %p126 = por %p124, %p125
    %p127 = scmp.ne.s32.totalorder %s118, %s119
    %p128 = scmp.eq.s32.totalorder %s19, 0
    %p129 = por %p127, %p128
    %p130 = scmp.ne.s32.totalorder %s118, %s119
    %p131 = scmp.eq.s32.totalorder %s20, 1
    %p132 = por %p130, %p131
    %p134 = scmp.ne.s32.totalorder %s119, %s133
    %p135 = scmp.eq.s32.totalorder %s20, 0
    %p136 = por %p134, %p135
    %s138 = sadd.s32 %s137, 1
    %p141 = scmp.eq.s32.totalorder %s14, 1
    %p142 = scmp.ne.s32.totalorder %s137, %s139
    %p143 = scmp.eq.s32.totalorder %s14, 0
    %p144 = por %p142, %p143
    %p145 = scmp.ne.s32.totalorder %s137, %s139
    %p146 = scmp.eq.s32.totalorder %s19, 1
    %p147 = por %p145, %p146
    %p148 = scmp.ne.s32.totalorder %s139, %s140
    %p149 = scmp.eq.s32.totalorder %s19, 0
    %p150 = por %p148, %p149
    %p151 = scmp.ne.s32.totalorder %s139, %s140
    %p152 = scmp.eq.s32.totalorder %s20, 1
    %p153 = por %p151, %p152
    %p155 = scmp.ne.s32.totalorder %s140, %s154
    %p156 = scmp.eq.s32.totalorder %s20, 0
    %p157 = por %p155, %p156
    %s159 = sadd.s32 %s158, 1
    %p162 = scmp.eq.s32.totalorder %s14, 1
    %p163 = scmp.ne.s32.totalorder %s158, %s160
    %p164 = scmp.eq.s32.totalorder %s14, 0
    %p165 = por %p163, %p164
    %p166 = scmp.ne.s32.totalorder %s158, %s160
    %p167 = scmp.eq.s32.totalorder %s19, 1
    %p168 = por %p166, %p167
    %p169 = scmp.ne.s32.totalorder %s160, %s161
    %p170 = scmp.eq.s32.totalorder %s19, 0
    %p171 = por %p169, %p170
    %p172 = scmp.ne.s32.totalorder %s160, %s161
    %p173 = scmp.eq.s32.totalorder %s20, 1
    %p174 = por %p172, %p173
    %p176 = scmp.ne.s32.totalorder %s161, %s175
    %p177 = scmp.eq.s32.totalorder %s20, 0
    %p178 = por %p176, %p177
    %s180 = sadd.s32 %s179, 1
    %p183 = scmp.eq.s32.totalorder %s14, 1
    %p184 = scmp.ne.s32.totalorder %s179, %s181
    %p185 = scmp.eq.s32.totalorder %s14, 0
    %p186 = por %p184, %p185
    %p187 = scmp.ne.s32.totalorder %s179, %s181
    %p188 = scmp.eq.s32.totalorder %s19, 1
    %p189 = por %p187, %p188
    %p190 = scmp.ne.s32.totalorder %s181, %s182
    %p191 = scmp.eq.s32.totalorder %s19, 0
    %p192 = por %p190, %p191
    %p193 = scmp.ne.s32.totalorder %s181, %s182
    %p194 = scmp.eq.s32.totalorder %s20, 1
    %p195 = por %p193, %p194
    %p197 = scmp.ne.s32.totalorder %s182, %s196
    %p198 = scmp.eq.s32.totalorder %s20, 0
    %p199 = por %p197, %p198
    %s200 = ssub.s32 %s14, %s21
    %p201 = scmp.eq.s32.totalorder %s200, 0
    %s203 = sadd.s32 %s202, 1
    %s204 = scalar_select %p201, %s202, %s203
    %p207 = pneg %p201
    %p208 = scmp.eq.s32.totalorder %s14, 1
    %p209 = por %p207, %p208
    %p210 = scmp.ne.s32.totalorder %s202, %s205
    %p211 = scmp.eq.s32.totalorder %s14, 0
    %p212 = por %p210, %p211
    %p213 = scmp.ne.s32.totalorder %s202, %s205
    %p214 = scmp.eq.s32.totalorder %s19, 1
    %p215 = por %p213, %p214
    %p216 = scmp.ne.s32.totalorder %s205, %s206
    %p217 = scmp.eq.s32.totalorder %s19, 0
    %p218 = por %p216, %p217
    %p219 = scmp.ne.s32.totalorder %s205, %s206
    %p220 = scmp.eq.s32.totalorder %s20, 1
    %p221 = por %p219, %p220
    %p223 = scmp.ne.s32.totalorder %s206, %s222
    %p224 = scmp.eq.s32.totalorder %s20, 0
    %p225 = por %p223, %p224
    %p226 = scmp.le.s32.totalorder 1, %s14
    %p227 = scmp.lt.s32.totalorder %s14, 3
    %p228 = pnand %p226, %p227
    %p229 = pneg %p228
    // Predicated region
    $region9: #{tpu_custom_call.1} parent=5 // pred_check
      _
    $region10: #{tpu_custom_call.1} parent=5 // pred_check_branch
      %231 = sbr.rel (%p228) target = $region12
    $region11: #{tpu_custom_call.1} parent=5 // pred_region
      %s232 = ssub.s32 %s14, 1
      // Predicated region
      $region13: #{tpu_custom_call.1} parent=11 // pred_check
        %p233 = pneg %p87
      $region14: #{tpu_custom_call.1} parent=11 // pred_check_branch
        %235 = sbr.rel (%p233) target = $region16
      $region15: #{tpu_custom_call.1} parent=11 // pred_region
        _
      $region16: #{tpu_custom_call.1} parent=11 // pred_fallthru
        _
      // Predicated region
      $region17: #{tpu_custom_call.1} parent=11 // pred_check
        %p236 = pneg %p108
      $region18: #{tpu_custom_call.1} parent=11 // pred_check_branch
        %238 = sbr.rel (%p236) target = $region20
      $region19: #{tpu_custom_call.1} parent=11 // pred_region
        _
      $region20: #{tpu_custom_call.1} parent=11 // pred_fallthru
        _
      // Predicated region
      $region21: #{tpu_custom_call.1} parent=11 // pred_check
        %p239 = pneg %p129
      $region22: #{tpu_custom_call.1} parent=11 // pred_check_branch
        %241 = sbr.rel (%p239) target = $region24
      $region23: #{tpu_custom_call.1} parent=11 // pred_region
        _
      $region24: #{tpu_custom_call.1} parent=11 // pred_fallthru
        _
      // Predicated region
      $region25: #{tpu_custom_call.1} parent=11 // pred_check
        %p242 = pneg %p150
      $region26: #{tpu_custom_call.1} parent=11 // pred_check_branch
        %244 = sbr.rel (%p242) target = $region28
      $region27: #{tpu_custom_call.1} parent=11 // pred_region
        _
      $region28: #{tpu_custom_call.1} parent=11 // pred_fallthru
        _
      // Predicated region
      $region29: #{tpu_custom_call.1} parent=11 // pred_check
        %p245 = pneg %p171
      $region30: #{tpu_custom_call.1} parent=11 // pred_check_branch
        %247 = sbr.rel (%p245) target = $region32
      $region31: #{tpu_custom_call.1} parent=11 // pred_region
        _
      $region32: #{tpu_custom_call.1} parent=11 // pred_fallthru
        _
      // Predicated region
      $region33: #{tpu_custom_call.1} parent=11 // pred_check
        %p248 = pneg %p192
      $region34: #{tpu_custom_call.1} parent=11 // pred_check_branch
        %250 = sbr.rel (%p248) target = $region36
      $region35: #{tpu_custom_call.1} parent=11 // pred_region
        _
      $region36: #{tpu_custom_call.1} parent=11 // pred_fallthru
        _
    $region12: #{tpu_custom_call.1} parent=5 // pred_fallthru
      _
    %p251 = scmp.lt.s32.totalorder %s14, 2
    // Predicated region
    $region37: #{tpu_custom_call.1} parent=5 // pred_check
      %p252 = pneg %p251
    $region38: #{tpu_custom_call.1} parent=5 // pred_check_branch
      %254 = sbr.rel (%p252) target = $region40
    $region39: #{tpu_custom_call.1} parent=5 // pred_region
      // Predicated region
      $region41: #{tpu_custom_call.1} parent=39 // pred_check
        %p255 = pneg %p34
      $region42: #{tpu_custom_call.1} parent=39 // pred_check_branch
        %257 = sbr.rel (%p255) target = $region44
      $region43: #{tpu_custom_call.1} parent=39 // pred_region
        %p258 = scmp.lt.s32.totalorder %s14, 1
        %s259 = scalar_select %p258, %s14, 1
        %s260 = smul.addr %s259, 5
        %s261 = smul.addr %s260, 8
        %s262 = scalar_lea.vmem %s0, %s261
      $region44: #{tpu_custom_call.1} parent=39 // pred_fallthru
        _
      // Predicated region
      $region45: #{tpu_custom_call.1} parent=39 // pred_check
        %p263 = pneg %p60
      $region46: #{tpu_custom_call.1} parent=39 // pred_check_branch
        %265 = sbr.rel (%p263) target = $region48
      $region47: #{tpu_custom_call.1} parent=39 // pred_region
        %p266 = scmp.lt.s32.totalorder %s14, 1
        %s267 = scalar_select %p266, %s14, 1
        %s268 = smul.addr %s267, 7
        %s269 = smul.addr %s268, 8
        %s270 = scalar_lea.vmem %s1, %s269
      $region48: #{tpu_custom_call.1} parent=39 // pred_fallthru
        _
    $region40: #{tpu_custom_call.1} parent=5 // pred_fallthru
      _
    %p271 = scmp.le.s32.totalorder 1, %s14
    %p272 = scmp.lt.s32.totalorder %s14, 3
    %p273 = pnand %p271, %p272
    %p274 = pneg %p273
    // Predicated region
    $region49: #{tpu_custom_call.1} parent=5 // pred_check
      _
    $region50: #{tpu_custom_call.1} parent=5 // pred_check_branch
      %276 = sbr.rel (%p273) target = $region52
    $region51: #{tpu_custom_call.1} parent=5 // pred_region
      %s277 = ssub.s32 %s14, 1
      %p278 = scmp.lt.s32.totalorder %s19, 1
      %s279 = scalar_select %p278, %s19, 1
      %s280 = smul.addr %s279, 5
      %s281 = smul.addr %s280, 8
      %s282 = scalar_lea.vmem %s0, %s281
      %p283 = pneg %p40
      %p284 = pneg %p37
      %p285 = scmp.lt.s32.totalorder %s19, 1
      %s286 = scalar_select %p285, %s19, 1
      %s287 = smul.addr %s286, 7
      %s288 = smul.addr %s287, 8
      %s289 = scalar_lea.vmem %s1, %s288
      %p290 = pneg %p66
      %p291 = pneg %p63
      %p292 = pneg %p87
      %p293 = pneg %p84
      %p294 = pneg %p108
      %p295 = pneg %p105
      %p296 = pneg %p129
      %p297 = pneg %p126
      %p298 = pneg %p150
      %p299 = pneg %p147
      %p300 = pneg %p171
      %p301 = pneg %p168
      %p302 = pneg %p192
      %p303 = pneg %p189
      %p304 = pneg %p218
      %p305 = pneg %p215
      %p306 = scmp.lt.s32.totalorder %s19, 1
      %s307 = scalar_select %p306, %s19, 1
      %s308 = smul.addr %s307, 5
      %s309 = smul.addr %s308, 8
      %s310 = scalar_lea.vmem %s8, %s309
      %p311 = scmp.lt.s32.totalorder %s19, 1
      %s312 = scalar_select %p311, %s19, 1
      %s313 = smul.addr %s312, 5
      %s314 = smul.addr %s313, 8
      %s315 = scalar_lea.vmem %s0, %s314
      %p316 = scmp.lt.s32.totalorder %s19, 1
      %s317 = scalar_select %p316, %s19, 1
      %s318 = smul.addr %s317, 7
      %s319 = smul.addr %s318, 8
      %s320 = scalar_lea.vmem %s1, %s319
      %p321 = scmp.lt.s32.totalorder %s19, 1
      %s322 = scalar_select %p321, %s19, 1
      %s323 = smul.addr %s322, 5
      %s324 = smul.addr %s323, 8
      %s325 = scalar_lea.vmem %s8, %s324
      %v327 = vld [vmem:[%s320] sm:$0xff]
      %v328 = vld [vmem:[%s320 + $0x8] sm:$0xff]
      %v329 = vld [vmem:[%s320 + $0x10] sm:$0xff]
      %v330 = vld [vmem:[%s320 + $0x18] sm:$0xff]
      %v331 = vld [vmem:[%s320 + $0x20] sm:$0xff]
      %v332 = vld [vmem:[%s320 + $0x28] sm:$0xff]
      %v333 = vld [vmem:[%s320 + $0x30] sm:$0x3]
      %vm334 = vcmask 261120
      %v335 = vsel %vm334, %v327, 0.0
      %336 = vadd.xlane.f32.xlu0 %v335
      %v337 = vpop.xlane.xlu0 %336
      %v338 = vsel %vm334, %v328, 0.0
      %339 = vadd.xlane.f32.xlu0 %v338
      %v340 = vpop.xlane.xlu0 %339
      %v341 = vsel %vm334, %v329, 0.0
      %342 = vadd.xlane.f32.xlu0 %v341
      %v343 = vpop.xlane.xlu0 %342
      %v344 = vsel %vm334, %v330, 0.0
      %345 = vadd.xlane.f32.xlu0 %v344
      %v346 = vpop.xlane.xlu0 %345
      %v347 = vsel %vm334, %v331, 0.0
      %348 = vadd.xlane.f32.xlu0 %v347
      %v349 = vpop.xlane.xlu0 %348
      %v350 = vsel %vm334, %v332, 0.0
      %351 = vadd.xlane.f32.xlu0 %v350
      %v352 = vpop.xlane.xlu0 %351
      %vm353 = vcmask 254976
      %v354 = vsel %vm353, %v333, 0.0
      %355 = vadd.xlane.f32.xlu0 %v354
      %v356 = vpop.xlane.xlu0 %355
      %v357 = vrcp.pop 32.0
      %v358 = vmul.f32 32.0, %v357
      %v359 = vsub.f32 1.0, %v358
      %v360 = vmul.f32 %v357, %v359
      %v361 = vadd.f32 %v357, %v360
      %vm362 = vweird.f32 %v357
      %v363 = vsel %vm362, %v357, %v361
      %v364 = vmul.f32 %v337, %v363
      %v365 = vmul.f32 %v340, %v363
      %v366 = vmul.f32 %v343, %v363
      %v367 = vmul.f32 %v346, %v363
      %v368 = vmul.f32 %v349, %v363
      %v369 = vmul.f32 %v352, %v363
      %v370 = vmul.f32 %v356, %v363
      %v371 = vsub.f32 %v327, %v364
      %v372 = vsub.f32 %v328, %v365
      %v373 = vsub.f32 %v329, %v366
      %v374 = vsub.f32 %v330, %v367
      %v375 = vsub.f32 %v331, %v368
      %v376 = vsub.f32 %v332, %v369
      %v377 = vsub.f32 %v333, %v370
      %v378 = vmul.f32 %v371, %v371
      %v379 = vmul.f32 %v372, %v372
      %v380 = vmul.f32 %v373, %v373
      %v381 = vmul.f32 %v374, %v374
      %v382 = vmul.f32 %v375, %v375
      %v383 = vmul.f32 %v376, %v376
      %v384 = vmul.f32 %v377, %v377
      %v385 = vsel %vm334, %v378, 0.0
      %386 = vadd.xlane.f32.xlu0 %v385
      %v387 = vpop.xlane.xlu0 %386
      %v388 = vsel %vm334, %v379, 0.0
      %389 = vadd.xlane.f32.xlu0 %v388
      %v390 = vpop.xlane.xlu0 %389
      %v391 = vsel %vm334, %v380, 0.0
      %392 = vadd.xlane.f32.xlu0 %v391
      %v393 = vpop.xlane.xlu0 %392
      %v394 = vsel %vm334, %v381, 0.0
      %395 = vadd.xlane.f32.xlu0 %v394
      %v396 = vpop.xlane.xlu0 %395
      %v397 = vsel %vm334, %v382, 0.0
      %398 = vadd.xlane.f32.xlu0 %v397
      %v399 = vpop.xlane.xlu0 %398
      %v400 = vsel %vm334, %v383, 0.0
      %401 = vadd.xlane.f32.xlu0 %v400
      %v402 = vpop.xlane.xlu0 %401
      %v403 = vsel %vm353, %v384, 0.0
      %404 = vadd.xlane.f32.xlu0 %v403
      %v405 = vpop.xlane.xlu0 %404
      %v406 = vmul.f32 %v387, %v363
      %v407 = vmul.f32 %v390, %v363
      %v408 = vmul.f32 %v393, %v363
      %v409 = vmul.f32 %v396, %v363
      %v410 = vmul.f32 %v399, %v363
      %v411 = vmul.f32 %v402, %v363
      %v412 = vmul.f32 %v405, %v363
      %v413 = vadd.f32 %v406, 1e-05
      %v414 = vadd.f32 %v407, 1e-05
      %v415 = vadd.f32 %v408, 1e-05
      %v416 = vadd.f32 %v409, 1e-05
      %v417 = vadd.f32 %v410, 1e-05
      %v418 = vadd.f32 %v411, 1e-05
      %v419 = vadd.f32 %v412, 1e-05
      %v420 = vrsqrt.pop %v413
      %v421 = vmul.f32 %v420, %v413
      %v422 = vmul.f32 %v421, %v420
      %v423 = vmul.f32 0.5, %v422
      %v424 = vsub.f32 1.5, %v423
      %v425 = vmul.f32 %v420, %v424
      %vm426 = vweird.f32 %v413
      %vm427 = vweird.f32 %v420
      %vm428 = vmor %vm426, %vm427
      %v429 = vsel %vm428, %v420, %v425
      %v430 = vrsqrt.pop %v414
      %v431 = vmul.f32 %v430, %v414
      %v432 = vmul.f32 %v431, %v430
      %v433 = vmul.f32 0.5, %v432
      %v434 = vsub.f32 1.5, %v433
      %v435 = vmul.f32 %v430, %v434
      %vm436 = vweird.f32 %v414
      %vm437 = vweird.f32 %v430
      %vm438 = vmor %vm436, %vm437
      %v439 = vsel %vm438, %v430, %v435
      %v440 = vrsqrt.pop %v415
      %v441 = vmul.f32 %v440, %v415
      %v442 = vmul.f32 %v441, %v440
      %v443 = vmul.f32 0.5, %v442
      %v444 = vsub.f32 1.5, %v443
      %v445 = vmul.f32 %v440, %v444
      %vm446 = vweird.f32 %v415
      %vm447 = vweird.f32 %v440
      %vm448 = vmor %vm446, %vm447
      %v449 = vsel %vm448, %v440, %v445
      %v450 = vrsqrt.pop %v416
      %v451 = vmul.f32 %v450, %v416
      %v452 = vmul.f32 %v451, %v450
      %v453 = vmul.f32 0.5, %v452
      %v454 = vsub.f32 1.5, %v453
      %v455 = vmul.f32 %v450, %v454
      %vm456 = vweird.f32 %v416
      %vm457 = vweird.f32 %v450
      %vm458 = vmor %vm456, %vm457
      %v459 = vsel %vm458, %v450, %v455
      %v460 = vrsqrt.pop %v417
      %v461 = vmul.f32 %v460, %v417
      %v462 = vmul.f32 %v461, %v460
      %v463 = vmul.f32 0.5, %v462
      %v464 = vsub.f32 1.5, %v463
      %v465 = vmul.f32 %v460, %v464
      %vm466 = vweird.f32 %v417
      %vm467 = vweird.f32 %v460
      %vm468 = vmor %vm466, %vm467
      %v469 = vsel %vm468, %v460, %v465
      %v470 = vrsqrt.pop %v418
      %v471 = vmul.f32 %v470, %v418
      %v472 = vmul.f32 %v471, %v470
      %v473 = vmul.f32 0.5, %v472
      %v474 = vsub.f32 1.5, %v473
      %v475 = vmul.f32 %v470, %v474
      %vm476 = vweird.f32 %v418
      %vm477 = vweird.f32 %v470
      %vm478 = vmor %vm476, %vm477
      %v479 = vsel %vm478, %v470, %v475
      %v480 = vrsqrt.pop %v419
      %v481 = vmul.f32 %v480, %v419
      %v482 = vmul.f32 %v481, %v480
      %v483 = vmul.f32 0.5, %v482
      %v484 = vsub.f32 1.5, %v483
      %v485 = vmul.f32 %v480, %v484
      %vm486 = vweird.f32 %v419
      %vm487 = vweird.f32 %v480
      %vm488 = vmor %vm486, %vm487
      %v489 = vsel %vm488, %v480, %v485
      %v490 = vmul.f32 %v371, %v429
      %v491 = vmul.f32 %v372, %v439
      %v492 = vmul.f32 %v373, %v449
      %v493 = vmul.f32 %v374, %v459
      %v494 = vmul.f32 %v375, %v469
      %v495 = vmul.f32 %v376, %v479
      %v496 = vmul.f32 %v377, %v489
      %v497 = vld [vmem:[%s5] sm:$0x1]
      %v499 = vperm.slane %v497, 0
      %v501 = vmul.f32 %v490, %v499
      %v502 = vmul.f32 %v491, %v499
      %v503 = vmul.f32 %v492, %v499
      %v504 = vmul.f32 %v493, %v499
      %v505 = vmul.f32 %v494, %v499
      %v506 = vmul.f32 %v495, %v499
      %v507 = vmul.f32 %v496, %v499
      %v508 = vld [vmem:[%s6] sm:$0x1]
      %v510 = vperm.slane %v508, 0
      %v512 = vadd.f32 %v501, %v510
      %v513 = vadd.f32 %v502, %v510
      %v514 = vadd.f32 %v503, %v510
      %v515 = vadd.f32 %v504, %v510
      %v516 = vadd.f32 %v505, %v510
      %v517 = vadd.f32 %v506, %v510
      %v518 = vadd.f32 %v507, %v510
      %v519 = vpack.c.bf16 %v513, %v512
      %v520 = vpack.c.bf16 %v515, %v514
      %v521 = vpack.c.bf16 %v517, %v516
      %v522 = vpack.c.bf16 %v518, %v518
      %v523 = vld [vmem:[%s315] sm:$0xff]
      %v524 = vld [vmem:[%s315 + $0x8] sm:$0xff]
      %v525 = vld [vmem:[%s315 + $0x10] sm:$0xff]
      %v526 = vld [vmem:[%s315 + $0x18] sm:$0xff]
      %v527 = vld [vmem:[%s315 + $0x20] sm:$0xf]
      %v528 = vpack.c.bf16 %v524, %v523
      %v529 = vpack.c.bf16 %v526, %v525
      %v530 = vpack.c.bf16 %v527, %v527
      %v531 = vld [vmem:[%s2] sm:$0xf]
      %v532 = vld [vmem:[%s2 + $0x4] sm:$0xf]
      %v533 = vld [vmem:[%s2 + $0x8] sm:$0xf]
      %v534 = vld [vmem:[%s2 + $0xc] sm:$0xf]
      %v539 = vunpack.c.l.b16 %v531
      %v540 = vunpack.c.l.b16 %v532
      %v541 = vunpack.c.l.b16 %v533
      %v542 = vunpack.c.l.b16 %v534
      %v543 = vpack.c.b16 %v540, %v539
      %v544 = vpack.c.b16 %v542, %v541
      %v548 = vsel %vm334, %v528, 0
      %v551 = vsel %vm334, %v529, 0
      %v554 = vsel %vm334, %v530, 0
      %556 = vmatpush.bf16.msra.mxu0 0
      %557 = vmatpush.bf16.msra.mxu0 0
      %558 = vmatpush.bf16.msra.mxu0 0
      %559 = vmatpush.bf16.msra.mxu0 0
      %560 = vmatpush.bf16.msra.mxu0 0
      %561 = vmatpush.bf16.msra.mxu0 0
      %562 = vmatpush.bf16.msra.mxu0 %v544
      %563 = vmatpush.bf16.msra.mxu0 %v543
      %564 = vmatmul.bf16.gmra.mxu0 %v548
      %v565 = vpop.f32.mrf.mxu0
      %v566 = vadd.f32 0.0, %v565
      %v567 = vpop.f32.mrf.mxu0
      %v568 = vadd.f32 0.0, %v567
      %569 = vmatmul.bf16.gmra.mxu0 %v551
      %v570 = vpop.f32.mrf.mxu0
      %v571 = vadd.f32 0.0, %v570
      %v572 = vpop.f32.mrf.mxu0
      %v573 = vadd.f32 0.0, %v572
      %574 = vmatmul.bf16.gmra.mxu0 %v554
      %v575 = vpop.f32.mrf.mxu0
      %v576 = vadd.f32 0.0, %v575
      %v577 = vpop.f32.mrf.mxu0
      %578 = vdwg.mxu0
      %v579 = vld [vmem:[%s3] sm:$0xf]
      %v580 = vld [vmem:[%s3 + $0x4] sm:$0xf]
      %v581 = vld [vmem:[%s3 + $0x8] sm:$0xf]
      %v582 = vld [vmem:[%s3 + $0xc] sm:$0xf]
      %v587 = vunpack.c.l.b16 %v579
      %v588 = vunpack.c.l.b16 %v580
      %v589 = vunpack.c.l.b16 %v581
      %v590 = vunpack.c.l.b16 %v582
      %v591 = vpack.c.b16 %v588, %v587
      %v592 = vpack.c.b16 %v590, %v589
      %v596 = vsel %vm334, %v519, 0
      %v599 = vsel %vm334, %v520, 0
      %v602 = vsel %vm334, %v521, 0
      %v605 = vsel %vm334, %v522, 0
      %607 = vmatpush.bf16.msra.mxu0 0
      %608 = vmatpush.bf16.msra.mxu0 0
      %609 = vmatpush.bf16.msra.mxu0 0
      %610 = vmatpush.bf16.msra.mxu0 0
      %611 = vmatpush.bf16.msra.mxu0 0
      %612 = vmatpush.bf16.msra.mxu0 0
      %613 = vmatpush.bf16.msra.mxu0 %v592
      %614 = vmatpush.bf16.msra.mxu0 %v591
      %615 = vmatmul.bf16.gmra.mxu0 %v596
      %v616 = vpop.f32.mrf.mxu0
      %v617 = vadd.f32 0.0, %v616
      %v618 = vpop.f32.mrf.mxu0
      %v619 = vadd.f32 0.0, %v618
      %620 = vmatmul.bf16.gmra.mxu0 %v599
      %v621 = vpop.f32.mrf.mxu0
      %v622 = vadd.f32 0.0, %v621
      %v623 = vpop.f32.mrf.mxu0
      %v624 = vadd.f32 0.0, %v623
      %625 = vmatmul.bf16.gmra.mxu0 %v602
      %v626 = vpop.f32.mrf.mxu0
      %v627 = vadd.f32 0.0, %v626
      %v628 = vpop.f32.mrf.mxu0
      %v629 = vadd.f32 0.0, %v628
      %630 = vmatmul.bf16.gmra.mxu0 %v605
      %v631 = vpop.f32.mrf.mxu0
      %v632 = vadd.f32 0.0, %v631
      %v633 = vpop.f32.mrf.mxu0
      %634 = vdwg.mxu0
      %v635 = vpack.c.bf16 %v566, %v566
      %v636 = vpack.c.bf16 %v568, %v568
      %v637 = vpack.c.bf16 %v571, %v571
      %v638 = vpack.c.bf16 %v573, %v573
      %v639 = vpack.c.bf16 %v576, %v576
      %v640 = vpack.c.bf16 %v617, %v617
      %v641 = vpack.c.bf16 %v619, %v619
      %v642 = vpack.c.bf16 %v622, %v622
      %v643 = vpack.c.bf16 %v624, %v624
      %v644 = vpack.c.bf16 %v627, %v627
      %v645 = vpack.c.bf16 %v629, %v629
      %v646 = vpack.c.bf16 %v632, %v632
      %v652 = vunpack.c.l.b16 %v635
      %v653 = vunpack.c.l.b16 %v636
      %v654 = vunpack.c.l.b16 %v637
      %v655 = vunpack.c.l.b16 %v638
      %v656 = vunpack.c.l.b16 %v639
      %v657 = vpack.c.b16 %v653, %v652
      %v658 = vpack.c.b16 %v655, %v654
      %v659 = vpack.c.b16 %v656, %v656
      %v667 = vunpack.c.l.b16 %v640
      %v668 = vunpack.c.l.b16 %v641
      %v669 = vunpack.c.l.b16 %v642
      %v670 = vunpack.c.l.b16 %v643
      %v671 = vunpack.c.l.b16 %v644
      %v672 = vunpack.c.l.b16 %v645
      %v673 = vunpack.c.l.b16 %v646
      %v674 = vpack.c.b16 %v668, %v667
      %v675 = vpack.c.b16 %v670, %v669
      %v676 = vpack.c.b16 %v672, %v671
      %v677 = vpack.c.b16 %v673, %v673
      %vm678 = vcmask 130048
      %v680 = vsel %vm678, %v657, 0
      %v683 = vsel %vm678, %v658, 0
      %v686 = vsel %vm678, %v659, 0
      %v689 = vsel %vm678, %v674, 0
      %v692 = vsel %vm678, %v675, 0
      %v695 = vsel %vm678, %v676, 0
      %v698 = vsel %vm678, %v677, 0
      %700 = vmatpush.bf16.xpose.msra.mxu0 0
      %701 = vmatpush.bf16.xpose.msra.mxu0 0
      %702 = vmatpush.bf16.xpose.msra.mxu0 0
      %703 = vmatpush.bf16.xpose.msra.mxu0 0
      %704 = vmatpush.bf16.xpose.msra.mxu0 %v698
      %705 = vmatpush.bf16.xpose.msra.mxu0 %v695
      %706 = vmatpush.bf16.xpose.msra.mxu0 %v692
      %707 = vmatpush.bf16.xpose.msra.mxu0 %v689
      %708 = vmatmul.bf16.gmra.mxu0 %v680
      %v709 = vpop.f32.mrf.mxu0
      %v710 = vadd.f32 0.0, %v709
      %v711 = vpop.f32.mrf.mxu0
      %v712 = vadd.f32 0.0, %v711
      %713 = vmatmul.bf16.gmra.mxu0 %v683
      %v714 = vpop.f32.mrf.mxu0
      %v715 = vadd.f32 0.0, %v714
      %v716 = vpop.f32.mrf.mxu0
      %v717 = vadd.f32 0.0, %v716
      %718 = vmatmul.bf16.gmra.mxu0 %v686
      %v719 = vpop.f32.mrf.mxu0
      %v720 = vadd.f32 0.0, %v719
      %v721 = vpop.f32.mrf.mxu0
      %722 = vdwg.mxu0
      %vm723 = vcmask 408576
      %v724 = vsel %vm723, %v710, -inf
      %725 = vmax.xlane.f32.xlu0 %v724
      %v726 = vpop.xlane.xlu0 %725
      %v727 = vsel %vm723, %v712, -inf
      %728 = vmax.xlane.f32.xlu0 %v727
      %v729 = vpop.xlane.xlu0 %728
      %v730 = vsel %vm723, %v715, -inf
      %731 = vmax.xlane.f32.xlu0 %v730
      %v732 = vpop.xlane.xlu0 %731
      %v733 = vsel %vm723, %v717, -inf
      %734 = vmax.xlane.f32.xlu0 %v733
      %v735 = vpop.xlane.xlu0 %734
      %vm736 = vcmask 404480
      %v737 = vsel %vm736, %v720, -inf
      %738 = vmax.xlane.f32.xlu0 %v737
      %v739 = vpop.xlane.xlu0 %738
      %v740 = vsub.f32 %v710, %v726
      %v741 = vsub.f32 %v712, %v729
      %v742 = vsub.f32 %v715, %v732
      %v743 = vsub.f32 %v717, %v735
      %v744 = vsub.f32 %v720, %v739
      %v745 = vmul.f32 %v740, 1.442695
      %v746 = vpow.pop %v745
      %v747 = vmul.f32 %v741, 1.442695
      %v748 = vpow.pop %v747
      %v749 = vmul.f32 %v742, 1.442695
      %v750 = vpow.pop %v749
      %v751 = vmul.f32 %v743, 1.442695
      %v752 = vpow.pop %v751
      %v753 = vmul.f32 %v744, 1.442695
      %v754 = vpow.pop %v753
      %v755 = vsel %vm723, %v746, 0.0
      %756 = vadd.xlane.f32.xlu0 %v755
      %v757 = vpop.xlane.xlu0 %756
      %v758 = vsel %vm723, %v748, 0.0
      %759 = vadd.xlane.f32.xlu0 %v758
      %v760 = vpop.xlane.xlu0 %759
      %v761 = vsel %vm723, %v750, 0.0
      %762 = vadd.xlane.f32.xlu0 %v761
      %v763 = vpop.xlane.xlu0 %762
      %v764 = vsel %vm723, %v752, 0.0
      %765 = vadd.xlane.f32.xlu0 %v764
      %v766 = vpop.xlane.xlu0 %765
      %v767 = vsel %vm736, %v754, 0.0
      %768 = vadd.xlane.f32.xlu0 %v767
      %v769 = vpop.xlane.xlu0 %768
      %v770 = vpack.c.bf16 %v748, %v746
      %v771 = vpack.c.bf16 %v752, %v750
      %v772 = vpack.c.bf16 %v754, %v754
      %773 = vrot.lane.b32.xlu0 %v674, 96
      %v774 = vpop.permute.xlu0 %773
      %775 = vrot.lane.b32.xlu0 %v675, 96
      %v776 = vpop.permute.xlu0 %775
      %777 = vrot.lane.b32.xlu0 %v676, 96
      %v778 = vpop.permute.xlu0 %777
      %779 = vrot.lane.b32.xlu0 %v677, 96
      %v780 = vpop.permute.xlu0 %779
      %v785 = vsel %vm723, %v770, 0
      %v788 = vsel %vm723, %v771, 0
      %v791 = vsel %vm723, %v772, 0
      %vm793 = vcmask 1040384
      %v795 = vsel %vm793, %v780, 0
      %797 = vmatpush.bf16.msra.mxu0 0
      %798 = vmatpush.bf16.msra.mxu0 0
      %799 = vmatpush.bf16.msra.mxu0 0
      %800 = vmatpush.bf16.msra.mxu0 0
      %801 = vmatpush.bf16.msra.mxu0 %v795
      %802 = vmatpush.bf16.msra.mxu0 %v778
      %803 = vmatpush.bf16.msra.mxu0 %v776
      %804 = vmatpush.bf16.msra.mxu0 %v774
      %805 = vmatmul.bf16.gmra.mxu0 %v785
      %v806 = vpop.f32.mrf.mxu0
      %v807 = vadd.f32 0.0, %v806
      %v808 = vpop.f32.mrf.mxu0
      %v809 = vadd.f32 0.0, %v808
      %810 = vmatmul.bf16.gmra.mxu0 %v788
      %v811 = vpop.f32.mrf.mxu0
      %v812 = vadd.f32 0.0, %v811
      %v813 = vpop.f32.mrf.mxu0
      %v814 = vadd.f32 0.0, %v813
      %815 = vmatmul.bf16.gmra.mxu0 %v791
      %v816 = vpop.f32.mrf.mxu0
      %v817 = vadd.f32 0.0, %v816
      %v818 = vpop.f32.mrf.mxu0
      %819 = vdwg.mxu0
      %v820 = vrcp.pop %v757
      %v821 = vrcp.pop %v760
      %v822 = vrcp.pop %v763
      %v823 = vrcp.pop %v766
      %v824 = vrcp.pop %v769
      %v825 = vmul.f32 %v807, %v820
      %v826 = vmul.f32 %v809, %v821
      %v827 = vmul.f32 %v812, %v822
      %v828 = vmul.f32 %v814, %v823
      %v829 = vmul.f32 %v817, %v824
      %v830 = vpack.c.bf16 %v825, %v825
      %v831 = vpack.c.bf16 %v826, %v826
      %v832 = vpack.c.bf16 %v827, %v827
      %v833 = vpack.c.bf16 %v828, %v828
      %v834 = vpack.c.bf16 %v829, %v829
      %835 = vrot.lane.b32.xlu0 %v657, 112
      %v836 = vpop.permute.xlu0 %835
      %837 = vrot.lane.b32.xlu0 %v658, 112
      %v838 = vpop.permute.xlu0 %837
      %839 = vrot.lane.b32.xlu0 %v659, 112
      %v840 = vpop.permute.xlu0 %839
      %841 = vrot.lane.b32.xlu0 %v674, 112
      %v842 = vpop.permute.xlu0 %841
      %843 = vrot.lane.b32.xlu0 %v675, 112
      %v844 = vpop.permute.xlu0 %843
      %845 = vrot.lane.b32.xlu0 %v676, 112
      %v846 = vpop.permute.xlu0 %845
      %847 = vrot.lane.b32.xlu0 %v677, 112
      %v848 = vpop.permute.xlu0 %847
      %v850 = vsel %vm678, %v836, 0
      %v853 = vsel %vm678, %v838, 0
      %v856 = vsel %vm678, %v840, 0
      %v859 = vsel %vm678, %v842, 0
      %v862 = vsel %vm678, %v844, 0
      %v865 = vsel %vm678, %v846, 0
      %v868 = vsel %vm678, %v848, 0
      %870 = vmatpush.bf16.xpose.msra.mxu0 0
      %871 = vmatpush.bf16.xpose.msra.mxu0 0
      %872 = vmatpush.bf16.xpose.msra.mxu0 0
      %873 = vmatpush.bf16.xpose.msra.mxu0 0
      %874 = vmatpush.bf16.xpose.msra.mxu0 %v868
      %875 = vmatpush.bf16.xpose.msra.mxu0 %v865
      %876 = vmatpush.bf16.xpose.msra.mxu0 %v862
      %877 = vmatpush.bf16.xpose.msra.mxu0 %v859
      %878 = vmatmul.bf16.gmra.mxu0 %v850
      %v879 = vpop.f32.mrf.mxu0
      %v880 = vadd.f32 0.0, %v879
      %v881 = vpop.f32.mrf.mxu0
      %v882 = vadd.f32 0.0, %v881
      %883 = vmatmul.bf16.gmra.mxu0 %v853
      %v884 = vpop.f32.mrf.mxu0
      %v885 = vadd.f32 0.0, %v884
      %v886 = vpop.f32.mrf.mxu0
      %v887 = vadd.f32 0.0, %v886
      %888 = vmatmul.bf16.gmra.mxu0 %v856
      %v889 = vpop.f32.mrf.mxu0
      %v890 = vadd.f32 0.0, %v889
      %v891 = vpop.f32.mrf.mxu0
      %892 = vdwg.mxu0
      %v893 = vsel %vm723, %v880, -inf
      %894 = vmax.xlane.f32.xlu0 %v893
      %v895 = vpop.xlane.xlu0 %894
      %v896 = vsel %vm723, %v882, -inf
      %897 = vmax.xlane.f32.xlu0 %v896
      %v898 = vpop.xlane.xlu0 %897
      %v899 = vsel %vm723, %v885, -inf
      %900 = vmax.xlane.f32.xlu0 %v899
      %v901 = vpop.xlane.xlu0 %900
      %v902 = vsel %vm723, %v887, -inf
      %903 = vmax.xlane.f32.xlu0 %v902
      %v904 = vpop.xlane.xlu0 %903
      %v905 = vsel %vm736, %v890, -inf
      %906 = vmax.xlane.f32.xlu0 %v905
      %v907 = vpop.xlane.xlu0 %906
      %v908 = vsub.f32 %v880, %v895
      %v909 = vsub.f32 %v882, %v898
      %v910 = vsub.f32 %v885, %v901
      %v911 = vsub.f32 %v887, %v904
      %v912 = vsub.f32 %v890, %v907
      %v913 = vmul.f32 %v908, 1.442695
      %v914 = vpow.pop %v913
      %v915 = vmul.f32 %v909, 1.442695
      %v916 = vpow.pop %v915
      %v917 = vmul.f32 %v910, 1.442695
      %v918 = vpow.pop %v917
      %v919 = vmul.f32 %v911, 1.442695
      %v920 = vpow.pop %v919
      %v921 = vmul.f32 %v912, 1.442695
      %v922 = vpow.pop %v921
      %v923 = vsel %vm723, %v914, 0.0
      %924 = vadd.xlane.f32.xlu0 %v923
      %v925 = vpop.xlane.xlu0 %924
      %v926 = vsel %vm723, %v916, 0.0
      %927 = vadd.xlane.f32.xlu0 %v926
      %v928 = vpop.xlane.xlu0 %927
      %v929 = vsel %vm723, %v918, 0.0
      %930 = vadd.xlane.f32.xlu0 %v929
      %v931 = vpop.xlane.xlu0 %930
      %v932 = vsel %vm723, %v920, 0.0
      %933 = vadd.xlane.f32.xlu0 %v932
      %v934 = vpop.xlane.xlu0 %933
      %v935 = vsel %vm736, %v922, 0.0
      %936 = vadd.xlane.f32.xlu0 %v935
      %v937 = vpop.xlane.xlu0 %936
      %v938 = vpack.c.bf16 %v916, %v914
      %v939 = vpack.c.bf16 %v920, %v918
      %v940 = vpack.c.bf16 %v922, %v922
      %941 = vrot.lane.b32.xlu0 %v674, 80
      %v942 = vpop.permute.xlu0 %941
      %943 = vrot.lane.b32.xlu0 %v675, 80
      %v944 = vpop.permute.xlu0 %943
      %945 = vrot.lane.b32.xlu0 %v676, 80
      %v946 = vpop.permute.xlu0 %945
      %947 = vrot.lane.b32.xlu0 %v677, 80
      %v948 = vpop.permute.xlu0 %947
      %v953 = vsel %vm723, %v938, 0
      %v956 = vsel %vm723, %v939, 0
      %v959 = vsel %vm723, %v940, 0
      %v962 = vsel %vm793, %v948, 0
      %964 = vmatpush.bf16.msra.mxu0 0
      %965 = vmatpush.bf16.msra.mxu0 0
      %966 = vmatpush.bf16.msra.mxu0 0
      %967 = vmatpush.bf16.msra.mxu0 0
      %968 = vmatpush.bf16.msra.mxu0 %v962
      %969 = vmatpush.bf16.msra.mxu0 %v946
      %970 = vmatpush.bf16.msra.mxu0 %v944
      %971 = vmatpush.bf16.msra.mxu0 %v942
      %972 = vmatmul.bf16.gmra.mxu0 %v953
      %v973 = vpop.f32.mrf.mxu0
      %v974 = vadd.f32 0.0, %v973
      %v975 = vpop.f32.mrf.mxu0
      %v976 = vadd.f32 0.0, %v975
      %977 = vmatmul.bf16.gmra.mxu0 %v956
      %v978 = vpop.f32.mrf.mxu0
      %v979 = vadd.f32 0.0, %v978
      %v980 = vpop.f32.mrf.mxu0
      %v981 = vadd.f32 0.0, %v980
      %982 = vmatmul.bf16.gmra.mxu0 %v959
      %v983 = vpop.f32.mrf.mxu0
      %v984 = vadd.f32 0.0, %v983
      %v985 = vpop.f32.mrf.mxu0
      %986 = vdwg.mxu0
      %v987 = vrcp.pop %v925
      %v988 = vrcp.pop %v928
      %v989 = vrcp.pop %v931
      %v990 = vrcp.pop %v934
      %v991 = vrcp.pop %v937
      %v992 = vmul.f32 %v974, %v987
      %v993 = vmul.f32 %v976, %v988
      %v994 = vmul.f32 %v979, %v989
      %v995 = vmul.f32 %v981, %v990
      %v996 = vmul.f32 %v984, %v991
      %v997 = vpack.c.bf16 %v992, %v992
      %v998 = vpack.c.bf16 %v993, %v993
      %v999 = vpack.c.bf16 %v994, %v994
      %v1000 = vpack.c.bf16 %v995, %v995
      %v1001 = vpack.c.bf16 %v996, %v996
      %v1007 = vunpack.c.l.b16 %v830
      %v1008 = vunpack.c.l.b16 %v831
      %v1009 = vunpack.c.l.b16 %v832
      %v1010 = vunpack.c.l.b16 %v833
      %v1011 = vunpack.c.l.b16 %v834
      %v1012 = vpack.c.b16 %v1008, %v1007
      %v1013 = vpack.c.b16 %v1010, %v1009
      %v1014 = vpack.c.b16 %v1011, %v1011
      %v1020 = vunpack.c.l.b16 %v997
      %v1021 = vunpack.c.l.b16 %v998
      %v1022 = vunpack.c.l.b16 %v999
      %v1023 = vunpack.c.l.b16 %v1000
      %v1024 = vunpack.c.l.b16 %v1001
      %v1025 = vpack.c.b16 %v1021, %v1020
      %v1026 = vpack.c.b16 %v1023, %v1022
      %v1027 = vpack.c.b16 %v1024, %v1024
      %1028 = vrot.lane.b32.xlu0 %v1025, 16
      %v1029 = vpop.permute.xlu0 %1028
      %1030 = vrot.lane.b32.xlu0 %v1026, 16
      %v1031 = vpop.permute.xlu0 %1030
      %1032 = vrot.lane.b32.xlu0 %v1027, 16
      %v1033 = vpop.permute.xlu0 %1032
      %v1036 = vsel %vm678, %v1012, %v1029
      %v1039 = vsel %vm678, %v1013, %v1031
      %v1042 = vsel %vm678, %v1014, %v1033
      %v1043 = vld [vmem:[%s4] sm:$0xf]
      %v1044 = vld [vmem:[%s4 + $0x4] sm:$0xf]
      %v1045 = vld [vmem:[%s4 + $0x8] sm:$0xf]
      %v1046 = vld [vmem:[%s4 + $0xc] sm:$0xf]
      %v1047 = vld [vmem:[%s7] sm:$0x1]
      %v1049 = vperm.slane %v1047, 0
      %v1055 = vunpack.c.l.b16 %v1043
      %v1056 = vunpack.c.l.b16 %v1044
      %v1057 = vunpack.c.l.b16 %v1045
      %v1058 = vunpack.c.l.b16 %v1046
      %v1059 = vpack.c.b16 %v1056, %v1055
      %v1060 = vpack.c.b16 %v1058, %v1057
      %v1063 = vsel %vm334, %v1036, 0
      %v1065 = vsel %vm334, %v1039, 0
      %v1067 = vsel %vm334, %v1042, 0
      %1069 = vmatpush.bf16.msra.mxu0 0
      %1070 = vmatpush.bf16.msra.mxu0 0
      %1071 = vmatpush.bf16.msra.mxu0 0
      %1072 = vmatpush.bf16.msra.mxu0 0
      %1073 = vmatpush.bf16.msra.mxu0 0
      %1074 = vmatpush.bf16.msra.mxu0 0
      %1075 = vmatpush.bf16.msra.mxu0 %v1060
      %1076 = vmatpush.bf16.msra.mxu0 %v1059
      %1077 = vmatmul.bf16.gmra.mxu0 %v1063
      %v1078 = vpop.f32.mrf.mxu0
      %v1079 = vadd.f32 %v1049, %v1078
      %v1080 = vpop.f32.mrf.mxu0
      %v1081 = vadd.f32 %v1049, %v1080
      %1082 = vmatmul.bf16.gmra.mxu0 %v1065
      %v1083 = vpop.f32.mrf.mxu0
      %v1084 = vadd.f32 %v1049, %v1083
      %v1085 = vpop.f32.mrf.mxu0
      %v1086 = vadd.f32 %v1049, %v1085
      %1087 = vmatmul.bf16.gmra.mxu0 %v1067
      %v1088 = vpop.f32.mrf.mxu0
      %v1089 = vadd.f32 %v1049, %v1088
      %v1090 = vpop.f32.mrf.mxu0
      %1091 = vdwg.mxu0
      %1092 = vst.msk [vmem:[%s325] sm:$0xff] %vm334, %v1079
      %1093 = vst.msk [vmem:[%s325 + $0x8] sm:$0xff] %vm334, %v1081
      %1094 = vst.msk [vmem:[%s325 + $0x10] sm:$0xff] %vm334, %v1084
      %1095 = vst.msk [vmem:[%s325 + $0x18] sm:$0xff] %vm334, %v1086
      %vm1096 = vcmask 257024
      %1097 = vst.msk [vmem:[%s325 + $0x20] sm:$0xf] %vm1096, %v1089
      %p1098 = scmp.lt.s32.totalorder %s19, 1
      %s1099 = scalar_select %p1098, %s19, 1
      %s1100 = smul.addr %s1099, 5
      %s1101 = smul.addr %s1100, 8
      %s1102 = scalar_lea.vmem %s8, %s1101
      // Predicated region
      $region53: #{tpu_custom_call.1} parent=51 // pred_check
        %p1103 = pneg %p215
      $region54: #{tpu_custom_call.1} parent=51 // pred_check_branch
        %1105 = sbr.rel (%p1103) target = $region56
      $region55: #{tpu_custom_call.1} parent=51 // pred_region
        _
      $region56: #{tpu_custom_call.1} parent=51 // pred_fallthru
        _
    $region52: #{tpu_custom_call.1} parent=5 // pred_fallthru
      _
    %p1106 = scmp.le.s32.totalorder 2, %s14
    // Predicated region
    $region57: #{tpu_custom_call.1} parent=5 // pred_check
      %p1107 = pneg %p1106
    $region58: #{tpu_custom_call.1} parent=5 // pred_check_branch
      %1109 = sbr.rel (%p1107) target = $region60
    $region59: #{tpu_custom_call.1} parent=5 // pred_region
      %s1110 = ssub.s32 %s14, 2
      // Predicated region
      $region61: #{tpu_custom_call.1} parent=59 // pred_check
        %p1111 = pneg %p221
      $region62: #{tpu_custom_call.1} parent=59 // pred_check_branch
        %1113 = sbr.rel (%p1111) target = $region64
      $region63: #{tpu_custom_call.1} parent=59 // pred_region
        %p1114 = scmp.lt.s32.totalorder %s20, 1
        %s1115 = scalar_select %p1114, %s20, 1
        %s1116 = smul.addr %s1115, 5
        %s1117 = smul.addr %s1116, 8
        %s1118 = scalar_lea.vmem %s8, %s1117
      $region64: #{tpu_custom_call.1} parent=59 // pred_fallthru
        _
    $region60: #{tpu_custom_call.1} parent=5 // pred_fallthru
      _
  $region6: #{tpu_custom_call.1} parent=0 // loop_footer
    %s18 = sadd.s32 1, %s14
  $region7: #{tpu_custom_call.1} parent=0 // loop_footer_branch
    %13 = sbr.rel target = $region3
  $region8: #{tpu_custom_call.1} parent=0 // loop_exit
    _

</llo_original>
